<compile_context>
chip_gen: v7x
topology: tpu7x:2x2x1
jax: 0.10.0
libtpu: 0.0.40
codegen_flags: <defaults>
</compile_context>

<pallas_src>
import jax
import jax.numpy as jnp
from jax.experimental import pallas as pl
from jax.experimental.pallas import tpu as pltpu

NEG_SLOPE = 0.01  # nn.LeakyReLU() default negative_slope

# NT dimension numbers: contract lhs dim 1 with rhs dim 1  ->  lhs @ rhs.T
_NT_DIMS = (((1,), (1,)), ((), ()))


def _leaky_relu(v):
    # max(v, slope*v) == LeakyReLU for 0 < slope < 1.
    return jnp.maximum(v, NEG_SLOPE * v)


def _round_up(v, m):
    return ((v + m - 1) // m) * m


def mlp_kernel(x_ref, w0t_ref, wmid_t_ref, ball_ref, w5t_ref, o_ref):
    """Whole-MLP forward for one batch tile, feature-major activations.

    x_ref      : (tile, F)     input rows (f32)
    w0t_ref    : (16, F)       fc0 weight, transposed
    wmid_t_ref : (4, 16, 16)   fc1..fc4 weights, transposed, stacked
    ball_ref   : (16, 6)       col i (i<5) = bias of fc_i; [0, 5] = fc5 bias
    w5t_ref    : (1, 16)       fc5 weight, transposed
    o_ref      : (1, 1, tile)  lane-dense sigmoid output row
    """
    f32 = jnp.float32
    x = x_ref[...].astype(f32)                      # (tile, F)
    ball = ball_ref[...]                            # (16, 6)

    # fc0: (16, F) contracted with (tile, F) on the feature axis -> (16, tile).
    # Dropout is identity at inference.
    h = jax.lax.dot_general(w0t_ref[...], x, _NT_DIMS, preferred_element_type=f32)
    h = _leaky_relu(h + ball[:, 0:1])               # (16,1) lane-broadcast bias

    # fc1 .. fc4 (statically unrolled): Wt(16,16) @ h(16,tile) -> (16,tile)
    for i in range(4):
        h = jnp.dot(wmid_t_ref[i], h, preferred_element_type=f32)
        h = _leaky_relu(h + ball[:, i + 1:i + 2])

    # fc5 -> sigmoid, already in lane-dense (1, tile) layout.
    z = jnp.dot(w5t_ref[...], h, preferred_element_type=f32) + ball[0:1, 5:6]
    o_ref[...] = jax.nn.sigmoid(z)[None].astype(o_ref.dtype)   # (1,1,tile)


def pack_params(params):
    """Pack 6 (W, b) pairs into 4 f32 slabs, weights pre-transposed."""
    w0t = params[0][0].T                                            # (16, F)
    wmid_t = jnp.stack([params[i][0].T for i in range(1, 5)], 0)    # (4,16,16)
    w5t = params[5][0].T                                            # (1, 16)
    b_cols = [params[i][1].reshape(-1) for i in range(5)]           # 5 x (16,)
    b5_col = jnp.zeros((16,), jnp.float32).at[0].set(params[5][1].reshape(()))
    ball = jnp.stack(b_cols + [b5_col], axis=1)                     # (16, 6)
    cast = lambda a: a.astype(jnp.float32)
    return tuple(map(cast, (w0t, wmid_t, ball, w5t)))


def net_forward(x, params, *, batch_tile=8192):
    """x: (B, F) float32. params: list of 6 (W(in,out), b(1,out)) pairs.

    Returns (B, 1) float32 sigmoid outputs.
    """
    B, F = x.shape

    # Batch tile: large (amortizes grid-step overhead), multiple of 8,
    # never larger than needed for the batch. Ragged tail handled via cdiv;
    # the OOB tail of the last block is garbage that is sliced off below.
    tile = _round_up(min(batch_tile, _round_up(B, 8)), 8)
    grid_b = pl.cdiv(B, tile)

    w0t, wmid_t, ball, w5t = pack_params(params)

    in_specs = [
        pl.BlockSpec((tile, F), lambda i: (i, 0)),            # x batch tile
        pl.BlockSpec(w0t.shape, lambda i: (0, 0)),            # (16, F)
        pl.BlockSpec(wmid_t.shape, lambda i: (0, 0, 0)),      # (4, 16, 16)
        pl.BlockSpec(ball.shape, lambda i: (0, 0)),           # (16, 6)
        pl.BlockSpec(w5t.shape, lambda i: (0, 0)),            # (1, 16)
    ]
    # Lane-dense output; second-minor block dim (1) equals the array dim (1).
    out_specs = pl.BlockSpec((1, 1, tile), lambda i: (i, 0, 0))

    out = pl.pallas_call(
        mlp_kernel,
        out_shape=jax.ShapeDtypeStruct((grid_b, 1, tile), jnp.float32),
        grid_spec=pltpu.PrefetchScalarGridSpec(
            num_scalar_prefetch=0,
            grid=(grid_b,),
            in_specs=in_specs,
            out_specs=out_specs,
        ),
        compiler_params=pltpu.CompilerParams(
            dimension_semantics=("parallel",),
            vmem_limit_bytes=32 * 1024 * 1024,
        ),
    )(x, w0t, wmid_t, ball, w5t)

    # (grid_b, 1, tile) row-major == batch order; drop the OOB tail rows.
    return out.reshape(grid_b * tile, 1)[:B]


def init_params(key, amount_features):
    """Deterministic init mimicking PyTorch nn.Linear (U(-1/sqrt(fan_in), +))."""
    dims = [(amount_features, 16), (16, 16), (16, 16), (16, 16), (16, 16), (16, 1)]
    params = []
    for (fan_in, fan_out) in dims:
        key, kw, kb = jax.random.split(key, 3)
        bound = 1.0 / jnp.sqrt(float(fan_in))
        w = jax.random.uniform(kw, (fan_in, fan_out), jnp.float32, -bound, bound)
        b = jax.random.uniform(kb, (1, fan_out), jnp.float32, -bound, bound)
        params.append((w, b))
    return params


def reference_forward(x, params):
    """Pure-JAX f32 reference (dropout = identity in eval)."""
    hp = jax.lax.Precision.HIGHEST
    h = x.astype(jnp.float32)
    for (w, b) in params[:-1]:
        z = jnp.dot(h, w, precision=hp) + b
        h = jnp.maximum(z, NEG_SLOPE * z)
    w, b = params[-1]
    return jax.nn.sigmoid(jnp.dot(h, w, precision=hp) + b)


if __name__ == "__main__":
    key = jax.random.PRNGKey(0)
    key_x, key_p, key_x2 = jax.random.split(key, 3)

    amount_features = 32
    params = init_params(key_p, amount_features)

    # Small shape consistent with the module (single, non-ragged tile).
    x_small = jax.random.normal(key_x, (8, amount_features), jnp.float32)
    out_small = jax.block_until_ready(net_forward(x_small, params))
    ref_small = reference_forward(x_small, params)
    assert out_small.shape == (8, 1)
    assert jnp.allclose(out_small, ref_small, atol=2e-3, rtol=2e-3), "small-batch mismatch"

    # Larger, non-multiple batch with a small tile: exercises the multi-step
    # 'parallel' grid and the ragged (OOB) last tile path.
    x_big = jax.random.normal(key_x2, (1000, amount_features), jnp.float32)
    out_big = jax.block_until_ready(net_forward(x_big, params, batch_tile=256))
    ref_big = reference_forward(x_big, params)
    assert out_big.shape == (1000, 1)
    assert jnp.allclose(out_big, ref_big, atol=2e-3, rtol=2e-3), "large-batch mismatch"

    # Same batch with the default large tile (single full-batch block).
    out_big2 = jax.block_until_ready(net_forward(x_big, params))
    assert out_big2.shape == (1000, 1)
    assert jnp.allclose(out_big2, ref_big, atol=2e-3, rtol=2e-3), "default-tile mismatch"

    print("KERNEL_OK")
</pallas_src>

<mosaic_0001>
module attributes {stable_mosaic.version = 11 : i64} {
  func.func @mlp_kernel(%arg0: i32, %arg1: memref<8x32xf32, #tpu.memory_space<vmem>>, %arg2: memref<16x32xf32, #tpu.memory_space<vmem>>, %arg3: memref<4x16x16xf32, #tpu.memory_space<vmem>>, %arg4: memref<16x6xf32, #tpu.memory_space<vmem>>, %arg5: memref<1x16xf32, #tpu.memory_space<vmem>>, %arg6: memref<1x1x8xf32, #tpu.memory_space<vmem>>) attributes {dimension_semantics = [#tpu.dimension_semantics<parallel>], iteration_bounds = array<i64: 1>, scalar_prefetch = 0 : i64, scratch_operands = 0 : i64, tpu.core_type = #tpu.core_type<tc>, window_params = [{transform_indices = @transform_0, window_bounds = array<i64: 8, 32>}, {pipeline_mode = #tpu.pipeline_mode<synchronous>, transform_indices = @transform_1, window_bounds = array<i64: 16, 32>}, {pipeline_mode = #tpu.pipeline_mode<synchronous>, transform_indices = @transform_2, window_bounds = array<i64: 4, 16, 16>}, {pipeline_mode = #tpu.pipeline_mode<synchronous>, transform_indices = @transform_3, window_bounds = array<i64: 16, 6>}, {pipeline_mode = #tpu.pipeline_mode<synchronous>, transform_indices = @transform_4, window_bounds = array<i64: 1, 16>}, {transform_indices = @transform_5, window_bounds = array<i64: 1, 1, 8>}]} {
    %c0 = arith.constant 0 : index
    %c0_0 = arith.constant 0 : index
    %0 = vector.load %arg1[%c0, %c0_0] : memref<8x32xf32, #tpu.memory_space<vmem>>, vector<8x32xf32>
    %c0_1 = arith.constant 0 : index
    %c0_2 = arith.constant 0 : index
    %1 = vector.load %arg4[%c0_1, %c0_2] : memref<16x6xf32, #tpu.memory_space<vmem>>, vector<16x6xf32>
    %c0_3 = arith.constant 0 : index
    %c0_4 = arith.constant 0 : index
    %2 = vector.load %arg2[%c0_3, %c0_4] : memref<16x32xf32, #tpu.memory_space<vmem>>, vector<16x32xf32>
    %cst = arith.constant dense<0.000000e+00> : vector<16x8xf32>
    %3 = tpu.matmul %2, %0, %cst {dimension_numbers = #tpu.dot_dimension_numbers<[1], [1], [0], [0], [0, 0, 1, 0], [], []>} : vector<16x32xf32>, vector<8x32xf32>, vector<16x8xf32> -> vector<16x8xf32>
    %4 = vector.extract_strided_slice %1 {offsets = [0, 0], sizes = [16, 1], strides = [1, 1]} : vector<16x6xf32> to vector<16x1xf32>
    %5 = vector.broadcast %4 : vector<16x1xf32> to vector<16x8xf32>
    %6 = arith.addf %3, %5 : vector<16x8xf32>
    %cst_5 = arith.constant 0.00999999977 : f32
    %7 = vector.broadcast %cst_5 : f32 to vector<16x8xf32>
    %8 = arith.mulf %7, %6 : vector<16x8xf32>
    %9 = arith.maximumf %6, %8 : vector<16x8xf32>
    %c0_6 = arith.constant 0 : index
    %c0_7 = arith.constant 0 : index
    %c0_8 = arith.constant 0 : index
    %10 = vector.load %arg3[%c0_6, %c0_7, %c0_8] : memref<4x16x16xf32, #tpu.memory_space<vmem>>, vector<1x16x16xf32>
    %11 = vector.shape_cast %10 : vector<1x16x16xf32> to vector<16x16xf32>
    %cst_9 = arith.constant dense<0.000000e+00> : vector<16x8xf32>
    %12 = tpu.matmul %11, %9, %cst_9 {dimension_numbers = #tpu.dot_dimension_numbers<[1], [0], [0], [1], [0, 0, 1, 1], [], []>} : vector<16x16xf32>, vector<16x8xf32>, vector<16x8xf32> -> vector<16x8xf32>
    %13 = vector.extract_strided_slice %1 {offsets = [0, 1], sizes = [16, 1], strides = [1, 1]} : vector<16x6xf32> to vector<16x1xf32>
    %14 = vector.broadcast %13 : vector<16x1xf32> to vector<16x8xf32>
    %15 = arith.addf %12, %14 : vector<16x8xf32>
    %cst_10 = arith.constant 0.00999999977 : f32
    %16 = vector.broadcast %cst_10 : f32 to vector<16x8xf32>
    %17 = arith.mulf %16, %15 : vector<16x8xf32>
    %18 = arith.maximumf %15, %17 : vector<16x8xf32>
    %c1 = arith.constant 1 : index
    %c0_11 = arith.constant 0 : index
    %c0_12 = arith.constant 0 : index
    %19 = vector.load %arg3[%c1, %c0_11, %c0_12] : memref<4x16x16xf32, #tpu.memory_space<vmem>>, vector<1x16x16xf32>
    %20 = vector.shape_cast %19 : vector<1x16x16xf32> to vector<16x16xf32>
    %cst_13 = arith.constant dense<0.000000e+00> : vector<16x8xf32>
    %21 = tpu.matmul %20, %18, %cst_13 {dimension_numbers = #tpu.dot_dimension_numbers<[1], [0], [0], [1], [0, 0, 1, 1], [], []>} : vector<16x16xf32>, vector<16x8xf32>, vector<16x8xf32> -> vector<16x8xf32>
    %22 = vector.extract_strided_slice %1 {offsets = [0, 2], sizes = [16, 1], strides = [1, 1]} : vector<16x6xf32> to vector<16x1xf32>
    %23 = vector.broadcast %22 : vector<16x1xf32> to vector<16x8xf32>
    %24 = arith.addf %21, %23 : vector<16x8xf32>
    %cst_14 = arith.constant 0.00999999977 : f32
    %25 = vector.broadcast %cst_14 : f32 to vector<16x8xf32>
    %26 = arith.mulf %25, %24 : vector<16x8xf32>
    %27 = arith.maximumf %24, %26 : vector<16x8xf32>
    %c2 = arith.constant 2 : index
    %c0_15 = arith.constant 0 : index
    %c0_16 = arith.constant 0 : index
    %28 = vector.load %arg3[%c2, %c0_15, %c0_16] : memref<4x16x16xf32, #tpu.memory_space<vmem>>, vector<1x16x16xf32>
    %29 = vector.shape_cast %28 : vector<1x16x16xf32> to vector<16x16xf32>
    %cst_17 = arith.constant dense<0.000000e+00> : vector<16x8xf32>
    %30 = tpu.matmul %29, %27, %cst_17 {dimension_numbers = #tpu.dot_dimension_numbers<[1], [0], [0], [1], [0, 0, 1, 1], [], []>} : vector<16x16xf32>, vector<16x8xf32>, vector<16x8xf32> -> vector<16x8xf32>
    %31 = vector.extract_strided_slice %1 {offsets = [0, 3], sizes = [16, 1], strides = [1, 1]} : vector<16x6xf32> to vector<16x1xf32>
    %32 = vector.broadcast %31 : vector<16x1xf32> to vector<16x8xf32>
    %33 = arith.addf %30, %32 : vector<16x8xf32>
    %cst_18 = arith.constant 0.00999999977 : f32
    %34 = vector.broadcast %cst_18 : f32 to vector<16x8xf32>
    %35 = arith.mulf %34, %33 : vector<16x8xf32>
    %36 = arith.maximumf %33, %35 : vector<16x8xf32>
    %c3 = arith.constant 3 : index
    %c0_19 = arith.constant 0 : index
    %c0_20 = arith.constant 0 : index
    %37 = vector.load %arg3[%c3, %c0_19, %c0_20] : memref<4x16x16xf32, #tpu.memory_space<vmem>>, vector<1x16x16xf32>
    %38 = vector.shape_cast %37 : vector<1x16x16xf32> to vector<16x16xf32>
    %cst_21 = arith.constant dense<0.000000e+00> : vector<16x8xf32>
    %39 = tpu.matmul %38, %36, %cst_21 {dimension_numbers = #tpu.dot_dimension_numbers<[1], [0], [0], [1], [0, 0, 1, 1], [], []>} : vector<16x16xf32>, vector<16x8xf32>, vector<16x8xf32> -> vector<16x8xf32>
    %40 = vector.extract_strided_slice %1 {offsets = [0, 4], sizes = [16, 1], strides = [1, 1]} : vector<16x6xf32> to vector<16x1xf32>
    %41 = vector.broadcast %40 : vector<16x1xf32> to vector<16x8xf32>
    %42 = arith.addf %39, %41 : vector<16x8xf32>
    %cst_22 = arith.constant 0.00999999977 : f32
    %43 = vector.broadcast %cst_22 : f32 to vector<16x8xf32>
    %44 = arith.mulf %43, %42 : vector<16x8xf32>
    %45 = arith.maximumf %42, %44 : vector<16x8xf32>
    %c0_23 = arith.constant 0 : index
    %c0_24 = arith.constant 0 : index
    %46 = vector.load %arg5[%c0_23, %c0_24] : memref<1x16xf32, #tpu.memory_space<vmem>>, vector<1x16xf32>
    %cst_25 = arith.constant dense<0.000000e+00> : vector<1x8xf32>
    %47 = tpu.matmul %46, %45, %cst_25 {dimension_numbers = #tpu.dot_dimension_numbers<[1], [0], [0], [1], [0, 0, 1, 1], [], []>} : vector<1x16xf32>, vector<16x8xf32>, vector<1x8xf32> -> vector<1x8xf32>
    %48 = vector.extract_strided_slice %1 {offsets = [0, 5], sizes = [1, 1], strides = [1, 1]} : vector<16x6xf32> to vector<1x1xf32>
    %49 = vector.broadcast %48 : vector<1x1xf32> to vector<1x8xf32>
    %50 = arith.addf %47, %49 : vector<1x8xf32>
    %51 = arith.negf %50 : vector<1x8xf32>
    %52 = math.exp %51 : vector<1x8xf32>
    %cst_26 = arith.constant 1.000000e+00 : f32
    %53 = vector.broadcast %cst_26 : f32 to vector<1x8xf32>
    %54 = arith.addf %53, %52 : vector<1x8xf32>
    %55 = arith.divf %53, %54 : vector<1x8xf32>
    %56 = vector.shape_cast %55 : vector<1x8xf32> to vector<1x1x8xf32>
    %c0_27 = arith.constant 0 : index
    %c0_28 = arith.constant 0 : index
    %c0_29 = arith.constant 0 : index
    %57 = vector.load %arg6[%c0_27, %c0_28, %c0_29] : memref<1x1x8xf32, #tpu.memory_space<vmem>>, vector<1x1x8xf32>
    tpu.vector_store %arg6[%c0_27, %c0_28, %c0_29], %56 {strides = array<i32>} : memref<1x1x8xf32, #tpu.memory_space<vmem>>, vector<1x1x8xf32>,
    return
  }
  func.func @transform_0(%arg0: i32) -> (i32, i32) {
    %c0_i32 = arith.constant 0 : i32
    %c0_i32_0 = arith.constant 0 : i32
    return %arg0, %c0_i32 : i32, i32
  }
  func.func @transform_1(%arg0: i32) -> (i32, i32) {
    %c0_i32 = arith.constant 0 : i32
    %c0_i32_0 = arith.constant 0 : i32
    %c0_i32_1 = arith.constant 0 : i32
    return %c0_i32, %c0_i32_0 : i32, i32
  }
  func.func @transform_2(%arg0: i32) -> (i32, i32, i32) {
    %c0_i32 = arith.constant 0 : i32
    %c0_i32_0 = arith.constant 0 : i32
    %c0_i32_1 = arith.constant 0 : i32
    %c0_i32_2 = arith.constant 0 : i32
    return %c0_i32, %c0_i32_0, %c0_i32_1 : i32, i32, i32
  }
  func.func @transform_3(%arg0: i32) -> (i32, i32) {
    %c0_i32 = arith.constant 0 : i32
    %c0_i32_0 = arith.constant 0 : i32
    %c0_i32_1 = arith.constant 0 : i32
    return %c0_i32, %c0_i32_0 : i32, i32
  }
  func.func @transform_4(%arg0: i32) -> (i32, i32) {
    %c0_i32 = arith.constant 0 : i32
    %c0_i32_0 = arith.constant 0 : i32
    %c0_i32_1 = arith.constant 0 : i32
    return %c0_i32, %c0_i32_0 : i32, i32
  }
  func.func @transform_5(%arg0: i32) -> (i32, i32, i32) {
    %c0_i32 = arith.constant 0 : i32
    %c0_i32_0 = arith.constant 0 : i32
    %c0_i32_1 = arith.constant 0 : i32
    return %arg0, %c0_i32, %c0_i32_0 : i32, i32, i32
  }
}

</mosaic_0001>

<llo_original>
// kernel: tpu_custom_call.1
$region0: #{tpu_custom_call.1}
  #allocation0 [shape = 'u32[]', space=smem, size = 0x4, offset = 0x4, fixed_abs, tag = 'smem constant byte address 0x4 - core index']
  #allocation1 [shape = 'u32[144,128]{1,0:T(1,128)}', space=vmem, size = 0x12000, scoped, tag = 'internal scratch']
  %s0 = inlined_call_operand.vmem [shape: f32[8,32], index: 0, kind: input, shape index: {}]
  %s1 = inlined_call_operand.vmem [shape: f32[16,32], index: 1, kind: input, shape index: {}]
  %s2 = inlined_call_operand.hbm [shape: f32[4,16,16], index: 2, kind: input, shape index: {}]
  %s3 = inlined_call_operand.vmem [shape: f32[16,6], index: 3, kind: input, shape index: {}]
  %s4 = inlined_call_operand.vmem [shape: f32[1,16], index: 4, kind: input, shape index: {}]
  %s5 = inlined_call_operand.hbm [shape: f32[1,1,8], index: 5, kind: output, shape index: {}]
  %s6 = sld [smem:[#allocation0]]
  $region34: #{tpu_custom_call.1} parent=0
    _
  %s8 = ssub.s32 1, %s6
  %s9 = scalar_select 0, %s8, %s6
  $region1: #{tpu_custom_call.1} parent=0
    #allocation2 [shape = 'u8[32768]{0}', space=vmem, size = 0x8000, scoped, tag = 'input window, operand 2, single buffered']
    #allocation3 [shape = 's32[1]{0}', space=sflag, size = 0x4, scoped, tag = 'scoped memory for tpu_custom_call.1']
    #allocation4 [shape = 's32[1]{0}', space=sflag, size = 0x4, scoped, tag = 'scoped memory for tpu_custom_call.1']
    #allocation5 [shape = 'u8[512]{0}', space=vmem, size = 0x400, scoped, tag = 'output window, operand 0, single buffered']
    %10 = vsyncpa [#allocation3], 0
    %11 = vsyncpa [#allocation4], 0
    // Predicated region
    $region2: #{tpu_custom_call.1} parent=1 // pred_check
      _
    $region3: #{tpu_custom_call.1} parent=1 // pred_check_branch
      %13 = sbr.rel (0) target = $region5
    $region4: #{tpu_custom_call.1} parent=1 // pred_region
      _
    $region5: #{tpu_custom_call.1} parent=1 // pred_fallthru
      _
    // Predicated region
    $region6: #{tpu_custom_call.1} parent=1 // pred_check
      _
    $region7: #{tpu_custom_call.1} parent=1 // pred_check_branch
      %15 = sbr.rel (0) target = $region9
    $region8: #{tpu_custom_call.1} parent=1 // pred_region
      _
    $region9: #{tpu_custom_call.1} parent=1 // pred_fallthru
      _
    // Predicated region
    $region10: #{tpu_custom_call.1} parent=1 // pred_check
      _
    $region11: #{tpu_custom_call.1} parent=1 // pred_check_branch
      %17 = sbr.rel (0) target = $region13
    $region12: #{tpu_custom_call.1} parent=1 // pred_region
      %s19 = ssub.s32 1024, 1024
      %20 = vsyncadd [#allocation3], %s19
      %s21 = sshll.u32 [#allocation2], 4
      %s22 = int_to_ptr.vmem [resolvable:$true] %s21
      %27 = dma.hbm_to_vmem [thread:$0]  %s2, 1024, %s22, [#allocation3], 128, 128, 8
    $region13: #{tpu_custom_call.1} parent=1 // pred_fallthru
      _
    // Predicated region
    $region14: #{tpu_custom_call.1} parent=1 // pred_check
      _
    $region15: #{tpu_custom_call.1} parent=1 // pred_check_branch
      %29 = sbr.rel (0) target = $region17
    $region16: #{tpu_custom_call.1} parent=1 // pred_region
      _
    $region17: #{tpu_custom_call.1} parent=1 // pred_fallthru
      _
    // Predicated region
    $region18: #{tpu_custom_call.1} parent=1 // pred_check
      _
    $region19: #{tpu_custom_call.1} parent=1 // pred_check_branch
      %31 = sbr.rel (0) target = $region21
    $region20: #{tpu_custom_call.1} parent=1 // pred_region
      _
    $region21: #{tpu_custom_call.1} parent=1 // pred_fallthru
      _
    // Predicated region
    $region22: #{tpu_custom_call.1} parent=1 // pred_check
      _
    $region23: #{tpu_custom_call.1} parent=1 // pred_check_branch
      %33 = sbr.rel (0) target = $region25
    $region24: #{tpu_custom_call.1} parent=1 // pred_region
      %34 = dma.done [#allocation3], 1024
    $region25: #{tpu_custom_call.1} parent=1 // pred_fallthru
      _
    %v35 = vld [vmem:[%s0] sm:$0xff]
    %v36 = vld [vmem:[%s3] sm:$0xff]
    %v37 = vld [vmem:[%s3 + $0x8] sm:$0xff]
    %v38 = vld [vmem:[%s1] sm:$0xff]
    %v39 = vld [vmem:[%s1 + $0x8] sm:$0xff]
    %41 = vset.pattern.permute.xlu0 0
    %42 = vperm.xlu0 %41, %v36
    %v43 = vpop.permute.xlu0 %42
    %46 = vset.pattern.permute.xlu0 0
    %47 = vperm.xlu0 %46, %v37
    %v48 = vpop.permute.xlu0 %47
    %vm50 = vcmask 261120
    %v52 = vsel %vm50, %v38, 0
    %v55 = vsel %vm50, %v39, 0
    %v58 = vsel %vm50, %v35, 0
    %60 = vmatprep.subr.mxu0 0.0
    %61 = vmatpush1.xpose.msra.mxu0 %v58
    %62 = vmatprep.subr.mxu0 0.0
    %63 = vmatpush1.xpose.msra.mxu0 0.0
    %64 = vmatprep.subr.mxu0 0.0
    %65 = vmatpush1.xpose.msra.mxu0 0.0
    %66 = vmatprep.subr.mxu0 0.0
    %67 = vmatpush1.xpose.msra.mxu0 0.0
    %68 = vmatprep.subr.mxu0 0.0
    %69 = vmatpush1.xpose.msra.mxu0 0.0
    %70 = vmatprep.subr.mxu0 0.0
    %71 = vmatpush1.xpose.msra.mxu0 0.0
    %72 = vmatprep.subr.mxu0 0.0
    %73 = vmatpush1.xpose.msra.mxu0 0.0
    %74 = vmatprep.subr.mxu0 0.0
    %75 = vmatpush1.xpose.msra.mxu0 0.0
    %76 = vmatprep.subr.mxu0 0.0
    %77 = vmatpush1.xpose.msra.mxu0 0.0
    %78 = vmatprep.subr.mxu0 0.0
    %79 = vmatpush1.xpose.msra.mxu0 0.0
    %80 = vmatprep.subr.mxu0 0.0
    %81 = vmatpush1.xpose.msra.mxu0 0.0
    %82 = vmatprep.subr.mxu0 0.0
    %83 = vmatpush1.xpose.msra.mxu0 0.0
    %84 = vmatprep.subr.mxu0 0.0
    %85 = vmatpush1.xpose.msra.mxu0 0.0
    %86 = vmatprep.subr.mxu0 0.0
    %87 = vmatpush1.xpose.msra.mxu0 0.0
    %88 = vmatprep.subr.mxu0 0.0
    %89 = vmatpush1.xpose.msra.mxu0 0.0
    %90 = vmatprep.subr.mxu0 0.0
    %91 = vmatpush1.xpose.msra.mxu0 0.0
    %92 = vmatprep.subr.mxu0 0.0
    %93 = vmatpush1.xpose.msra.mxu0 0.0
    %94 = vmatprep.subr.mxu0 0.0
    %95 = vmatpush1.xpose.msra.mxu0 0.0
    %96 = vmatprep.subr.mxu0 0.0
    %97 = vmatpush1.xpose.msra.mxu0 0.0
    %98 = vmatprep.subr.mxu0 0.0
    %99 = vmatpush1.xpose.msra.mxu0 0.0
    %100 = vmatprep.subr.mxu0 0.0
    %101 = vmatpush1.xpose.msra.mxu0 0.0
    %102 = vmatprep.subr.mxu0 0.0
    %103 = vmatpush1.xpose.msra.mxu0 0.0
    %104 = vmatprep.subr.mxu0 0.0
    %105 = vmatpush1.xpose.msra.mxu0 0.0
    %106 = vmatprep.subr.mxu0 0.0
    %107 = vmatpush1.xpose.msra.mxu0 0.0
    %108 = vmatprep.subr.mxu0 0.0
    %109 = vmatpush1.xpose.msra.mxu0 0.0
    %110 = vmatprep.subr.mxu0 0.0
    %111 = vmatpush1.xpose.msra.mxu0 0.0
    %112 = vmatprep.subr.mxu0 0.0
    %113 = vmatpush1.xpose.msra.mxu0 0.0
    %114 = vmatprep.subr.mxu0 0.0
    %115 = vmatpush1.xpose.msra.mxu0 0.0
    %116 = vmatprep.subr.mxu0 0.0
    %117 = vmatpush1.xpose.msra.mxu0 0.0
    %118 = vmatprep.subr.mxu0 0.0
    %119 = vmatpush1.xpose.msra.mxu0 0.0
    %120 = vmatprep.subr.mxu0 0.0
    %121 = vmatpush1.xpose.msra.mxu0 0.0
    %122 = vmatprep.subr.mxu0 0.0
    %123 = vmatpush1.xpose.msra.mxu0 0.0
    %124 = vmatprep.mubr.f32.mxu0 0.0
    %125 = vmatmul.mubr.f32.gmra.mrb[0].mxu0 %v52
    %v126 = vpop.f32.mrb[0].mxu0
    %v127 = vadd.f32 %v43, %v126
    %v128 = vpop.f32.mrb[0].mxu0
    %129 = vmatprep.mubr.f32.mxu0 0.0
    %130 = vmatmul.mubr.f32.gmra.mrb[0].mxu0 %v55
    %v131 = vpop.f32.mrb[0].mxu0
    %v132 = vadd.f32 %v48, %v131
    %v133 = vpop.f32.mrb[0].mxu0
    %134 = vdwg.mxu0
    %v135 = vmul.f32 %v127, 0.01
    %v136 = vmul.f32 %v132, 0.01
    %v137 = vmax.f32 %v127, %v135
    %v138 = vmax.f32 %v132, %v136
    %v139 = vld [vmem:[#allocation2] sm:$0xff]
    %v140 = vld [vmem:[#allocation2 + $0x8] sm:$0xff]
    %141 = vset.pattern.permute.xlu0 1
    %142 = vperm.xlu0 %141, %v36
    %v143 = vpop.permute.xlu0 %142
    %145 = vset.pattern.permute.xlu0 1
    %146 = vperm.xlu0 %145, %v37
    %v147 = vpop.permute.xlu0 %146
    %vm149 = vcmask 130048
    %v151 = vsel %vm149, %v139, 0
    %v154 = vsel %vm149, %v140, 0
    %156 = vmatprep.subr.mxu0 0.0
    %157 = vmatpush1.msra.mxu0 %v137
    %158 = vmatprep.subr.mxu0 0.0
    %159 = vmatpush1.msra.mxu0 %v138
    %160 = vmatprep.subr.mxu0 0.0
    %161 = vmatpush1.msra.mxu0 0.0
    %162 = vmatprep.subr.mxu0 0.0
    %163 = vmatpush1.msra.mxu0 0.0
    %164 = vmatprep.subr.mxu0 0.0
    %165 = vmatpush1.msra.mxu0 0.0
    %166 = vmatprep.subr.mxu0 0.0
    %167 = vmatpush1.msra.mxu0 0.0
    %168 = vmatprep.subr.mxu0 0.0
    %169 = vmatpush1.msra.mxu0 0.0
    %170 = vmatprep.subr.mxu0 0.0
    %171 = vmatpush1.msra.mxu0 0.0
    %172 = vmatprep.subr.mxu0 0.0
    %173 = vmatpush1.msra.mxu0 0.0
    %174 = vmatprep.subr.mxu0 0.0
    %175 = vmatpush1.msra.mxu0 0.0
    %176 = vmatprep.subr.mxu0 0.0
    %177 = vmatpush1.msra.mxu0 0.0
    %178 = vmatprep.subr.mxu0 0.0
    %179 = vmatpush1.msra.mxu0 0.0
    %180 = vmatprep.subr.mxu0 0.0
    %181 = vmatpush1.msra.mxu0 0.0
    %182 = vmatprep.subr.mxu0 0.0
    %183 = vmatpush1.msra.mxu0 0.0
    %184 = vmatprep.subr.mxu0 0.0
    %185 = vmatpush1.msra.mxu0 0.0
    %186 = vmatprep.subr.mxu0 0.0
    %187 = vmatpush1.msra.mxu0 0.0
    %188 = vmatprep.subr.mxu0 0.0
    %189 = vmatpush1.msra.mxu0 0.0
    %190 = vmatprep.subr.mxu0 0.0
    %191 = vmatpush1.msra.mxu0 0.0
    %192 = vmatprep.subr.mxu0 0.0
    %193 = vmatpush1.msra.mxu0 0.0
    %194 = vmatprep.subr.mxu0 0.0
    %195 = vmatpush1.msra.mxu0 0.0
    %196 = vmatprep.subr.mxu0 0.0
    %197 = vmatpush1.msra.mxu0 0.0
    %198 = vmatprep.subr.mxu0 0.0
    %199 = vmatpush1.msra.mxu0 0.0
    %200 = vmatprep.subr.mxu0 0.0
    %201 = vmatpush1.msra.mxu0 0.0
    %202 = vmatprep.subr.mxu0 0.0
    %203 = vmatpush1.msra.mxu0 0.0
    %204 = vmatprep.subr.mxu0 0.0
    %205 = vmatpush1.msra.mxu0 0.0
    %206 = vmatprep.subr.mxu0 0.0
    %207 = vmatpush1.msra.mxu0 0.0
    %208 = vmatprep.subr.mxu0 0.0
    %209 = vmatpush1.msra.mxu0 0.0
    %210 = vmatprep.subr.mxu0 0.0
    %211 = vmatpush1.msra.mxu0 0.0
    %212 = vmatprep.subr.mxu0 0.0
    %213 = vmatpush1.msra.mxu0 0.0
    %214 = vmatprep.subr.mxu0 0.0
    %215 = vmatpush1.msra.mxu0 0.0
    %216 = vmatprep.subr.mxu0 0.0
    %217 = vmatpush1.msra.mxu0 0.0
    %218 = vmatprep.subr.mxu0 0.0
    %219 = vmatpush1.msra.mxu0 0.0
    %220 = vmatprep.mubr.f32.mxu0 0.0
    %221 = vmatmul.mubr.f32.gmra.mrb[0].mxu0 %v151
    %v222 = vpop.f32.mrb[0].mxu0
    %v223 = vadd.f32 %v143, %v222
    %v224 = vpop.f32.mrb[0].mxu0
    %225 = vmatprep.mubr.f32.mxu0 0.0
    %226 = vmatmul.mubr.f32.gmra.mrb[0].mxu0 %v154
    %v227 = vpop.f32.mrb[0].mxu0
    %v228 = vadd.f32 %v147, %v227
    %v229 = vpop.f32.mrb[0].mxu0
    %230 = vdwg.mxu0
    %v231 = vmul.f32 %v223, 0.01
    %v232 = vmul.f32 %v228, 0.01
    %v233 = vmax.f32 %v223, %v231
    %v234 = vmax.f32 %v228, %v232
    %s235 = scalar_lea.vmem [#allocation2], 16
    %v236 = vld [vmem:[%s235] sm:$0xff]
    %v237 = vld [vmem:[%s235 + $0x8] sm:$0xff]
    %238 = vset.pattern.permute.xlu0 2
    %239 = vperm.xlu0 %238, %v36
    %v240 = vpop.permute.xlu0 %239
    %242 = vset.pattern.permute.xlu0 2
    %243 = vperm.xlu0 %242, %v37
    %v244 = vpop.permute.xlu0 %243
    %v247 = vsel %vm149, %v236, 0
    %v250 = vsel %vm149, %v237, 0
    %252 = vmatprep.subr.mxu0 0.0
    %253 = vmatpush1.msra.mxu0 %v233
    %254 = vmatprep.subr.mxu0 0.0
    %255 = vmatpush1.msra.mxu0 %v234
    %256 = vmatprep.subr.mxu0 0.0
    %257 = vmatpush1.msra.mxu0 0.0
    %258 = vmatprep.subr.mxu0 0.0
    %259 = vmatpush1.msra.mxu0 0.0
    %260 = vmatprep.subr.mxu0 0.0
    %261 = vmatpush1.msra.mxu0 0.0
    %262 = vmatprep.subr.mxu0 0.0
    %263 = vmatpush1.msra.mxu0 0.0
    %264 = vmatprep.subr.mxu0 0.0
    %265 = vmatpush1.msra.mxu0 0.0
    %266 = vmatprep.subr.mxu0 0.0
    %267 = vmatpush1.msra.mxu0 0.0
    %268 = vmatprep.subr.mxu0 0.0
    %269 = vmatpush1.msra.mxu0 0.0
    %270 = vmatprep.subr.mxu0 0.0
    %271 = vmatpush1.msra.mxu0 0.0
    %272 = vmatprep.subr.mxu0 0.0
    %273 = vmatpush1.msra.mxu0 0.0
    %274 = vmatprep.subr.mxu0 0.0
    %275 = vmatpush1.msra.mxu0 0.0
    %276 = vmatprep.subr.mxu0 0.0
    %277 = vmatpush1.msra.mxu0 0.0
    %278 = vmatprep.subr.mxu0 0.0
    %279 = vmatpush1.msra.mxu0 0.0
    %280 = vmatprep.subr.mxu0 0.0
    %281 = vmatpush1.msra.mxu0 0.0
    %282 = vmatprep.subr.mxu0 0.0
    %283 = vmatpush1.msra.mxu0 0.0
    %284 = vmatprep.subr.mxu0 0.0
    %285 = vmatpush1.msra.mxu0 0.0
    %286 = vmatprep.subr.mxu0 0.0
    %287 = vmatpush1.msra.mxu0 0.0
    %288 = vmatprep.subr.mxu0 0.0
    %289 = vmatpush1.msra.mxu0 0.0
    %290 = vmatprep.subr.mxu0 0.0
    %291 = vmatpush1.msra.mxu0 0.0
    %292 = vmatprep.subr.mxu0 0.0
    %293 = vmatpush1.msra.mxu0 0.0
    %294 = vmatprep.subr.mxu0 0.0
    %295 = vmatpush1.msra.mxu0 0.0
    %296 = vmatprep.subr.mxu0 0.0
    %297 = vmatpush1.msra.mxu0 0.0
    %298 = vmatprep.subr.mxu0 0.0
    %299 = vmatpush1.msra.mxu0 0.0
    %300 = vmatprep.subr.mxu0 0.0
    %301 = vmatpush1.msra.mxu0 0.0
    %302 = vmatprep.subr.mxu0 0.0
    %303 = vmatpush1.msra.mxu0 0.0
    %304 = vmatprep.subr.mxu0 0.0
    %305 = vmatpush1.msra.mxu0 0.0
    %306 = vmatprep.subr.mxu0 0.0
    %307 = vmatpush1.msra.mxu0 0.0
    %308 = vmatprep.subr.mxu0 0.0
    %309 = vmatpush1.msra.mxu0 0.0
    %310 = vmatprep.subr.mxu0 0.0
    %311 = vmatpush1.msra.mxu0 0.0
    %312 = vmatprep.subr.mxu0 0.0
    %313 = vmatpush1.msra.mxu0 0.0
    %314 = vmatprep.subr.mxu0 0.0
    %315 = vmatpush1.msra.mxu0 0.0
    %316 = vmatprep.mubr.f32.mxu0 0.0
    %317 = vmatmul.mubr.f32.gmra.mrb[0].mxu0 %v247
    %v318 = vpop.f32.mrb[0].mxu0
    %v319 = vadd.f32 %v240, %v318
    %v320 = vpop.f32.mrb[0].mxu0
    %321 = vmatprep.mubr.f32.mxu0 0.0
    %322 = vmatmul.mubr.f32.gmra.mrb[0].mxu0 %v250
    %v323 = vpop.f32.mrb[0].mxu0
    %v324 = vadd.f32 %v244, %v323
    %v325 = vpop.f32.mrb[0].mxu0
    %326 = vdwg.mxu0
    %v327 = vmul.f32 %v319, 0.01
    %v328 = vmul.f32 %v324, 0.01
    %v329 = vmax.f32 %v319, %v327
    %v330 = vmax.f32 %v324, %v328
    %s331 = scalar_lea.vmem [#allocation2], 32
    %v332 = vld [vmem:[%s331] sm:$0xff]
    %v333 = vld [vmem:[%s331 + $0x8] sm:$0xff]
    %334 = vset.pattern.permute.xlu0 3
    %335 = vperm.xlu0 %334, %v36
    %v336 = vpop.permute.xlu0 %335
    %338 = vset.pattern.permute.xlu0 3
    %339 = vperm.xlu0 %338, %v37
    %v340 = vpop.permute.xlu0 %339
    %v343 = vsel %vm149, %v332, 0
    %v346 = vsel %vm149, %v333, 0
    %348 = vmatprep.subr.mxu0 0.0
    %349 = vmatpush1.msra.mxu0 %v329
    %350 = vmatprep.subr.mxu0 0.0
    %351 = vmatpush1.msra.mxu0 %v330
    %352 = vmatprep.subr.mxu0 0.0
    %353 = vmatpush1.msra.mxu0 0.0
    %354 = vmatprep.subr.mxu0 0.0
    %355 = vmatpush1.msra.mxu0 0.0
    %356 = vmatprep.subr.mxu0 0.0
    %357 = vmatpush1.msra.mxu0 0.0
    %358 = vmatprep.subr.mxu0 0.0
    %359 = vmatpush1.msra.mxu0 0.0
    %360 = vmatprep.subr.mxu0 0.0
    %361 = vmatpush1.msra.mxu0 0.0
    %362 = vmatprep.subr.mxu0 0.0
    %363 = vmatpush1.msra.mxu0 0.0
    %364 = vmatprep.subr.mxu0 0.0
    %365 = vmatpush1.msra.mxu0 0.0
    %366 = vmatprep.subr.mxu0 0.0
    %367 = vmatpush1.msra.mxu0 0.0
    %368 = vmatprep.subr.mxu0 0.0
    %369 = vmatpush1.msra.mxu0 0.0
    %370 = vmatprep.subr.mxu0 0.0
    %371 = vmatpush1.msra.mxu0 0.0
    %372 = vmatprep.subr.mxu0 0.0
    %373 = vmatpush1.msra.mxu0 0.0
    %374 = vmatprep.subr.mxu0 0.0
    %375 = vmatpush1.msra.mxu0 0.0
    %376 = vmatprep.subr.mxu0 0.0
    %377 = vmatpush1.msra.mxu0 0.0
    %378 = vmatprep.subr.mxu0 0.0
    %379 = vmatpush1.msra.mxu0 0.0
    %380 = vmatprep.subr.mxu0 0.0
    %381 = vmatpush1.msra.mxu0 0.0
    %382 = vmatprep.subr.mxu0 0.0
    %383 = vmatpush1.msra.mxu0 0.0
    %384 = vmatprep.subr.mxu0 0.0
    %385 = vmatpush1.msra.mxu0 0.0
    %386 = vmatprep.subr.mxu0 0.0
    %387 = vmatpush1.msra.mxu0 0.0
    %388 = vmatprep.subr.mxu0 0.0
    %389 = vmatpush1.msra.mxu0 0.0
    %390 = vmatprep.subr.mxu0 0.0
    %391 = vmatpush1.msra.mxu0 0.0
    %392 = vmatprep.subr.mxu0 0.0
    %393 = vmatpush1.msra.mxu0 0.0
    %394 = vmatprep.subr.mxu0 0.0
    %395 = vmatpush1.msra.mxu0 0.0
    %396 = vmatprep.subr.mxu0 0.0
    %397 = vmatpush1.msra.mxu0 0.0
    %398 = vmatprep.subr.mxu0 0.0
    %399 = vmatpush1.msra.mxu0 0.0
    %400 = vmatprep.subr.mxu0 0.0
    %401 = vmatpush1.msra.mxu0 0.0
    %402 = vmatprep.subr.mxu0 0.0
    %403 = vmatpush1.msra.mxu0 0.0
    %404 = vmatprep.subr.mxu0 0.0
    %405 = vmatpush1.msra.mxu0 0.0
    %406 = vmatprep.subr.mxu0 0.0
    %407 = vmatpush1.msra.mxu0 0.0
    %408 = vmatprep.subr.mxu0 0.0
    %409 = vmatpush1.msra.mxu0 0.0
    %410 = vmatprep.subr.mxu0 0.0
    %411 = vmatpush1.msra.mxu0 0.0
    %412 = vmatprep.mubr.f32.mxu0 0.0
    %413 = vmatmul.mubr.f32.gmra.mrb[0].mxu0 %v343
    %v414 = vpop.f32.mrb[0].mxu0
    %v415 = vadd.f32 %v336, %v414
    %v416 = vpop.f32.mrb[0].mxu0
    %417 = vmatprep.mubr.f32.mxu0 0.0
    %418 = vmatmul.mubr.f32.gmra.mrb[0].mxu0 %v346
    %v419 = vpop.f32.mrb[0].mxu0
    %v420 = vadd.f32 %v340, %v419
    %v421 = vpop.f32.mrb[0].mxu0
    %422 = vdwg.mxu0
    %v423 = vmul.f32 %v415, 0.01
    %v424 = vmul.f32 %v420, 0.01
    %v425 = vmax.f32 %v415, %v423
    %v426 = vmax.f32 %v420, %v424
    %s427 = scalar_lea.vmem [#allocation2], 48
    %v428 = vld [vmem:[%s427] sm:$0xff]
    %v429 = vld [vmem:[%s427 + $0x8] sm:$0xff]
    %430 = vset.pattern.permute.xlu0 4
    %431 = vperm.xlu0 %430, %v36
    %v432 = vpop.permute.xlu0 %431
    %434 = vset.pattern.permute.xlu0 4
    %435 = vperm.xlu0 %434, %v37
    %v436 = vpop.permute.xlu0 %435
    %v439 = vsel %vm149, %v428, 0
    %v442 = vsel %vm149, %v429, 0
    %444 = vmatprep.subr.mxu0 0.0
    %445 = vmatpush1.msra.mxu0 %v425
    %446 = vmatprep.subr.mxu0 0.0
    %447 = vmatpush1.msra.mxu0 %v426
    %448 = vmatprep.subr.mxu0 0.0
    %449 = vmatpush1.msra.mxu0 0.0
    %450 = vmatprep.subr.mxu0 0.0
    %451 = vmatpush1.msra.mxu0 0.0
    %452 = vmatprep.subr.mxu0 0.0
    %453 = vmatpush1.msra.mxu0 0.0
    %454 = vmatprep.subr.mxu0 0.0
    %455 = vmatpush1.msra.mxu0 0.0
    %456 = vmatprep.subr.mxu0 0.0
    %457 = vmatpush1.msra.mxu0 0.0
    %458 = vmatprep.subr.mxu0 0.0
    %459 = vmatpush1.msra.mxu0 0.0
    %460 = vmatprep.subr.mxu0 0.0
    %461 = vmatpush1.msra.mxu0 0.0
    %462 = vmatprep.subr.mxu0 0.0
    %463 = vmatpush1.msra.mxu0 0.0
    %464 = vmatprep.subr.mxu0 0.0
    %465 = vmatpush1.msra.mxu0 0.0
    %466 = vmatprep.subr.mxu0 0.0
    %467 = vmatpush1.msra.mxu0 0.0
    %468 = vmatprep.subr.mxu0 0.0
    %469 = vmatpush1.msra.mxu0 0.0
    %470 = vmatprep.subr.mxu0 0.0
    %471 = vmatpush1.msra.mxu0 0.0
    %472 = vmatprep.subr.mxu0 0.0
    %473 = vmatpush1.msra.mxu0 0.0
    %474 = vmatprep.subr.mxu0 0.0
    %475 = vmatpush1.msra.mxu0 0.0
    %476 = vmatprep.subr.mxu0 0.0
    %477 = vmatpush1.msra.mxu0 0.0
    %478 = vmatprep.subr.mxu0 0.0
    %479 = vmatpush1.msra.mxu0 0.0
    %480 = vmatprep.subr.mxu0 0.0
    %481 = vmatpush1.msra.mxu0 0.0
    %482 = vmatprep.subr.mxu0 0.0
    %483 = vmatpush1.msra.mxu0 0.0
    %484 = vmatprep.subr.mxu0 0.0
    %485 = vmatpush1.msra.mxu0 0.0
    %486 = vmatprep.subr.mxu0 0.0
    %487 = vmatpush1.msra.mxu0 0.0
    %488 = vmatprep.subr.mxu0 0.0
    %489 = vmatpush1.msra.mxu0 0.0
    %490 = vmatprep.subr.mxu0 0.0
    %491 = vmatpush1.msra.mxu0 0.0
    %492 = vmatprep.subr.mxu0 0.0
    %493 = vmatpush1.msra.mxu0 0.0
    %494 = vmatprep.subr.mxu0 0.0
    %495 = vmatpush1.msra.mxu0 0.0
    %496 = vmatprep.subr.mxu0 0.0
    %497 = vmatpush1.msra.mxu0 0.0
    %498 = vmatprep.subr.mxu0 0.0
    %499 = vmatpush1.msra.mxu0 0.0
    %500 = vmatprep.subr.mxu0 0.0
    %501 = vmatpush1.msra.mxu0 0.0
    %502 = vmatprep.subr.mxu0 0.0
    %503 = vmatpush1.msra.mxu0 0.0
    %504 = vmatprep.subr.mxu0 0.0
    %505 = vmatpush1.msra.mxu0 0.0
    %506 = vmatprep.subr.mxu0 0.0
    %507 = vmatpush1.msra.mxu0 0.0
    %508 = vmatprep.mubr.f32.mxu0 0.0
    %509 = vmatmul.mubr.f32.gmra.mrb[0].mxu0 %v439
    %v510 = vpop.f32.mrb[0].mxu0
    %v511 = vadd.f32 %v432, %v510
    %v512 = vpop.f32.mrb[0].mxu0
    %513 = vmatprep.mubr.f32.mxu0 0.0
    %514 = vmatmul.mubr.f32.gmra.mrb[0].mxu0 %v442
    %v515 = vpop.f32.mrb[0].mxu0
    %v516 = vadd.f32 %v436, %v515
    %v517 = vpop.f32.mrb[0].mxu0
    %518 = vdwg.mxu0
    %v519 = vmul.f32 %v511, 0.01
    %v520 = vmul.f32 %v516, 0.01
    %v521 = vmax.f32 %v511, %v519
    %v522 = vmax.f32 %v516, %v520
    %v523 = vld [vmem:[%s4] sm:$0x1]
    %524 = vset.pattern.permute.xlu0 5
    %525 = vperm.xlu0 %524, %v36
    %v526 = vpop.permute.xlu0 %525
    %v529 = vsel %vm149, %v523, 0
    %531 = vmatprep.subr.mxu0 0.0
    %532 = vmatpush1.msra.mxu0 %v521
    %533 = vmatprep.subr.mxu0 0.0
    %534 = vmatpush1.msra.mxu0 %v522
    %535 = vmatprep.subr.mxu0 0.0
    %536 = vmatpush1.msra.mxu0 0.0
    %537 = vmatprep.subr.mxu0 0.0
    %538 = vmatpush1.msra.mxu0 0.0
    %539 = vmatprep.subr.mxu0 0.0
    %540 = vmatpush1.msra.mxu0 0.0
    %541 = vmatprep.subr.mxu0 0.0
    %542 = vmatpush1.msra.mxu0 0.0
    %543 = vmatprep.subr.mxu0 0.0
    %544 = vmatpush1.msra.mxu0 0.0
    %545 = vmatprep.subr.mxu0 0.0
    %546 = vmatpush1.msra.mxu0 0.0
    %547 = vmatprep.subr.mxu0 0.0
    %548 = vmatpush1.msra.mxu0 0.0
    %549 = vmatprep.subr.mxu0 0.0
    %550 = vmatpush1.msra.mxu0 0.0
    %551 = vmatprep.subr.mxu0 0.0
    %552 = vmatpush1.msra.mxu0 0.0
    %553 = vmatprep.subr.mxu0 0.0
    %554 = vmatpush1.msra.mxu0 0.0
    %555 = vmatprep.subr.mxu0 0.0
    %556 = vmatpush1.msra.mxu0 0.0
    %557 = vmatprep.subr.mxu0 0.0
    %558 = vmatpush1.msra.mxu0 0.0
    %559 = vmatprep.subr.mxu0 0.0
    %560 = vmatpush1.msra.mxu0 0.0
    %561 = vmatprep.subr.mxu0 0.0
    %562 = vmatpush1.msra.mxu0 0.0
    %563 = vmatprep.subr.mxu0 0.0
    %564 = vmatpush1.msra.mxu0 0.0
    %565 = vmatprep.subr.mxu0 0.0
    %566 = vmatpush1.msra.mxu0 0.0
    %567 = vmatprep.subr.mxu0 0.0
    %568 = vmatpush1.msra.mxu0 0.0
    %569 = vmatprep.subr.mxu0 0.0
    %570 = vmatpush1.msra.mxu0 0.0
    %571 = vmatprep.subr.mxu0 0.0
    %572 = vmatpush1.msra.mxu0 0.0
    %573 = vmatprep.subr.mxu0 0.0
    %574 = vmatpush1.msra.mxu0 0.0
    %575 = vmatprep.subr.mxu0 0.0
    %576 = vmatpush1.msra.mxu0 0.0
    %577 = vmatprep.subr.mxu0 0.0
    %578 = vmatpush1.msra.mxu0 0.0
    %579 = vmatprep.subr.mxu0 0.0
    %580 = vmatpush1.msra.mxu0 0.0
    %581 = vmatprep.subr.mxu0 0.0
    %582 = vmatpush1.msra.mxu0 0.0
    %583 = vmatprep.subr.mxu0 0.0
    %584 = vmatpush1.msra.mxu0 0.0
    %585 = vmatprep.subr.mxu0 0.0
    %586 = vmatpush1.msra.mxu0 0.0
    %587 = vmatprep.subr.mxu0 0.0
    %588 = vmatpush1.msra.mxu0 0.0
    %589 = vmatprep.subr.mxu0 0.0
    %590 = vmatpush1.msra.mxu0 0.0
    %591 = vmatprep.subr.mxu0 0.0
    %592 = vmatpush1.msra.mxu0 0.0
    %593 = vmatprep.subr.mxu0 0.0
    %594 = vmatpush1.msra.mxu0 0.0
    %595 = vmatprep.mubr.f32.mxu0 0.0
    %596 = vmatmul.mubr.f32.gmra.mrb[0].mxu0 %v529
    %v597 = vpop.f32.mrb[0].mxu0
    %v598 = vadd.f32 %v526, %v597
    %v599 = vpop.f32.mrb[0].mxu0
    %600 = vdwg.mxu0
    %v601 = vxor.u32 %v598, 2147483648
    %v602 = vmul.f32 %v601, 1.442695
    %v603 = vpow.pop %v602
    %v604 = vadd.f32 %v603, 1.0
    %v605 = vrcp.pop %v604
    %v606 = vmul.f32 1.0, %v605
    %vm607 = vcmask 57344
    %608 = vst.msk [vmem:[#allocation5] sm:$0x1] %vm607, %v606
    // Predicated region
    $region26: #{tpu_custom_call.1} parent=1 // pred_check
      _
    $region27: #{tpu_custom_call.1} parent=1 // pred_check_branch
      %610 = sbr.rel (0) target = $region29
    $region28: #{tpu_custom_call.1} parent=1 // pred_region
      %s612 = ssub.s32 16, 16
      %613 = vsyncadd [#allocation4], %s612
      %s615 = sshll.u32 [#allocation5], 4
      %s616 = int_to_ptr.vmem [resolvable:$true] %s615
      %618 = dma.vmem_to_hbm [thread:$0]  %s616, 16, %s5, [#allocation4]
    $region29: #{tpu_custom_call.1} parent=1 // pred_fallthru
      _
    // Predicated region
    $region30: #{tpu_custom_call.1} parent=1 // pred_check
      _
    $region31: #{tpu_custom_call.1} parent=1 // pred_check_branch
      %620 = sbr.rel (0) target = $region33
    $region32: #{tpu_custom_call.1} parent=1 // pred_region
      %621 = dma.done [#allocation4], 16
    $region33: #{tpu_custom_call.1} parent=1 // pred_fallthru
      _
    %622 = vsyncpa [#allocation3], 1
    %623 = vsyncpa [#allocation4], 1

</llo_original>
